<compile_context>
chip_gen: v7x
topology: tpu7x:2x2x1
jax: 0.10.0
libtpu: 0.0.40
codegen_flags: <defaults>
</compile_context>

<pallas_src>
import functools

import jax
import jax.numpy as jnp
import numpy as np
from jax.experimental import pallas as pl
from jax.experimental.pallas import tpu as pltpu


def block2_kernel(xpad_ref, w1_ref, w2_ref, out_ref, *, mxu_dtype):
    # xpad_ref: (H+4, W*C)    zero-row-padded image for this batch element
    #                         (image row r lives at padded row r+2); resident
    #                         in VMEM across the row-tile grid axis.
    # w1_ref:   (3, W*C, W*C) block-banded conv1 weights (one band per kernel row)
    # w2_ref:   (3, W*C, W*C) block-banded conv2 weights
    # out_ref:  (TH, W*C)     output image rows [t*TH, (t+1)*TH)
    th, wc = out_ref.shape
    h_img = xpad_ref.shape[0] - 4
    r0 = pl.program_id(1) * th

    # ---- h = relu(conv1(x)) on an extended (TH+2)-row tile ------------------
    # h tile row j corresponds to image row (r0 - 1 + j).
    acc1 = jnp.zeros((th + 2, wc), jnp.float32)
    for d in range(3):
        xs = xpad_ref[pl.ds(r0 + d, th + 2), :].astype(mxu_dtype)
        acc1 = acc1 + jnp.dot(xs, w1_ref[d].astype(mxu_dtype),
                              preferred_element_type=jnp.float32)
    h = jnp.maximum(acc1, 0.0)

    # conv2's SAME padding in height: h rows outside the image must be zero,
    # not the value conv1 computes from the zero-extended x halo.
    row = jax.lax.broadcasted_iota(jnp.int32, (th + 2, 1), 0) + (r0 - 1)
    h = jnp.where((row >= 0) & (row < h_img), h, 0.0)

    # ---- out = relu(conv2(h) + x) --------------------------------------------
    acc2 = jnp.zeros((th, wc), jnp.float32)
    for d in range(3):
        acc2 = acc2 + jnp.dot(h[d:d + th].astype(mxu_dtype),
                              w2_ref[d].astype(mxu_dtype),
                              preferred_element_type=jnp.float32)
    res = xpad_ref[pl.ds(r0 + 2, th), :].astype(jnp.float32)
    out_ref[...] = jnp.maximum(acc2 + res, 0.0).astype(out_ref.dtype)


def _banded_weights(w, width, mxu_dtype):
    """(3,3,Cin,Cout) HWIO -> (3, W*Cin, W*Cout) block-banded matrices.

    band[d][x*Cin+ci, y*Cout+co] = w[d, x-y+1, ci, co] for |x-y| <= 1 else 0, so
    `xrow @ band[d]` performs the width-direction ('SAME'-padded) part of the conv
    for kernel row d with the channel mix folded into the same MXU contraction.
    """
    wi = np.arange(width)[:, None]
    wo = np.arange(width)[None, :]
    shift = np.stack([(wi == wo + dj - 1) for dj in range(3)]).astype(np.float32)
    shift = jnp.asarray(shift, dtype=w.dtype)
    cin, cout = w.shape[2], w.shape[3]
    band = jnp.einsum("jxy,djio->dxiyo", shift, w)
    return band.reshape(3, width * cin, width * cout).astype(mxu_dtype)


def block2_forward(x, w1, w2, *, row_tile=None, mxu_dtype=None,
                   vmem_limit_bytes=None):
    """x: (N,H,W,Cin) NHWC; w1: (3,3,Cin,Cout) HWIO; w2: (3,3,Cout,Cout) HWIO."""
    n, h, w, cin = x.shape
    cout = w1.shape[-1]
    assert w1.shape == (3, 3, cin, cout)
    assert w2.shape == (3, 3, cout, cout)
    assert cin == cout, "residual add requires in_channel == out_channel"
    if mxu_dtype is None:
        mxu_dtype = x.dtype

    if row_tile is None or row_tile >= h:
        th = h
    else:
        if h % row_tile != 0 or row_tile % 8 != 0:
            raise ValueError(
                f"row_tile={row_tile} must divide H={h} and be a multiple of 8")
        th = row_tile
    n_t = h // th

    wcin, wcout = w * cin, w * cout

    # Fold (W, C) into the lane axis; add the 2-row top/bottom halo once in the
    # wrapper (a contiguous, lane-dense pad of 4 rows total -- negligible).
    xpad = jnp.pad(x.reshape(n, h, wcin), ((0, 0), (2, 2), (0, 0)))
    w1b = _banded_weights(w1, w, mxu_dtype)
    w2b = _banded_weights(w2, w, mxu_dtype)

    flops = (2 * 3 * n * (h + 2 * n_t) * wcin * wcout
             + 2 * 3 * n * h * wcout * wcout)
    bytes_accessed = ((xpad.size + n * h * wcout) * x.dtype.itemsize
                      + (w1b.size + w2b.size) * jnp.dtype(mxu_dtype).itemsize)

    out = pl.pallas_call(
        functools.partial(block2_kernel, mxu_dtype=mxu_dtype),
        out_shape=jax.ShapeDtypeStruct((n, h, wcout), x.dtype),
        grid=(n, n_t),
        in_specs=[
            # whole padded image per batch element, resident across row tiles
            pl.BlockSpec((None, h + 4, wcin), lambda b, t: (b, 0, 0)),
            pl.BlockSpec((3, wcin, wcout), lambda b, t: (0, 0, 0)),
            pl.BlockSpec((3, wcout, wcout), lambda b, t: (0, 0, 0)),
        ],
        out_specs=pl.BlockSpec((None, th, wcout), lambda b, t: (b, t, 0)),
        compiler_params=pltpu.CompilerParams(
            dimension_semantics=("parallel", "parallel"),
            vmem_limit_bytes=vmem_limit_bytes),
        cost_estimate=pl.CostEstimate(
            flops=int(flops), transcendentals=0,
            bytes_accessed=int(bytes_accessed)),
    )(xpad, w1b, w2b)
    return out.reshape(n, h, w, cout)


def block2_reference(x, w1, w2):
    """Pure-JAX reference matching the PyTorch semantics (NHWC)."""
    dn = ("NHWC", "HWIO", "NHWC")
    h = jax.lax.conv_general_dilated(x, w1, (1, 1), "SAME",
                                     dimension_numbers=dn)
    h = jnp.maximum(h, 0.0)
    o = jax.lax.conv_general_dilated(h, w2, (1, 1), "SAME",
                                     dimension_numbers=dn)
    return jnp.maximum(o + x, 0.0)


if __name__ == "__main__":
    # PyTorch forward receives x of shape (2, 4, 16, 16) NCHW with OIHW conv
    # weights; build those and transpose to the NHWC / HWIO kernel layout.
    N, C, H, W = 2, 4, 16, 16
    key = jax.random.PRNGKey(0)
    kx, kw1, kw2 = jax.random.split(key, 3)
    x_nchw = jax.random.normal(kx, (N, C, H, W), dtype=jnp.float32)
    w1_oihw = jax.random.normal(kw1, (C, C, 3, 3), dtype=jnp.float32) * 0.1
    w2_oihw = jax.random.normal(kw2, (C, C, 3, 3), dtype=jnp.float32) * 0.1

    x = jnp.transpose(x_nchw, (0, 2, 3, 1))        # NCHW -> NHWC
    w1 = jnp.transpose(w1_oihw, (2, 3, 1, 0))      # OIHW -> HWIO
    w2 = jnp.transpose(w2_oihw, (2, 3, 1, 0))

    ref = jax.block_until_ready(block2_reference(x, w1, w2))

    # Exact-precision path (f32 MXU operands).
    out = jax.block_until_ready(jax.jit(block2_forward)(x, w1, w2))
    assert out.shape == (N, H, W, C)
    assert jnp.allclose(out, ref, rtol=1e-4, atol=1e-4), "f32 mismatch vs reference"

    # bf16-fed MXU fast path (v6e/v7x), f32 accumulation + f32 elementwise.
    fwd_bf16 = jax.jit(lambda a, b, c: block2_forward(a, b, c,
                                                      mxu_dtype=jnp.bfloat16))
    out_bf16 = jax.block_until_ready(fwd_bf16(x, w1, w2))
    assert jnp.allclose(out_bf16, ref, rtol=1e-1, atol=1e-1), "bf16 mismatch"

    print("KERNEL_OK")
</pallas_src>

<mosaic_0001>
module attributes {stable_mosaic.version = 11 : i64} {
  func.func @block2_kernel(%arg0: i32, %arg1: i32, %arg2: memref<1x20x64xf32, #tpu.memory_space<vmem>>, %arg3: memref<3x64x64xf32, #tpu.memory_space<vmem>>, %arg4: memref<3x64x64xf32, #tpu.memory_space<vmem>>, %arg5: memref<1x16x64xf32, #tpu.memory_space<vmem>>) attributes {dimension_semantics = [#tpu.dimension_semantics<parallel>, #tpu.dimension_semantics<parallel>], iteration_bounds = array<i64: 2, 1>, scalar_prefetch = 0 : i64, scratch_operands = 0 : i64, tpu.core_type = #tpu.core_type<tc>, window_params = [{transform_indices = @transform_0, window_bounds = array<i64: 1, 20, 64>}, {pipeline_mode = #tpu.pipeline_mode<synchronous>, transform_indices = @transform_1, window_bounds = array<i64: 3, 64, 64>}, {pipeline_mode = #tpu.pipeline_mode<synchronous>, transform_indices = @transform_2, window_bounds = array<i64: 3, 64, 64>}, {transform_indices = @transform_3, window_bounds = array<i64: 1, 16, 64>}]} {
    %c16_i32 = arith.constant 16 : i32
    %0 = arith.muli %arg1, %c16_i32 : i32
    %cst = arith.constant 0.000000e+00 : f32
    %1 = vector.broadcast %cst : f32 to vector<18x64xf32>
    %c0_i32 = arith.constant 0 : i32
    %2 = arith.addi %0, %c0_i32 : i32
    %c0 = arith.constant 0 : index
    %3 = arith.index_cast %2 : i32 to index
    %c0_0 = arith.constant 0 : index
    %4 = vector.load %arg2[%c0, %3, %c0_0] : memref<1x20x64xf32, #tpu.memory_space<vmem>>, vector<1x18x64xf32>
    %5 = vector.shape_cast %4 : vector<1x18x64xf32> to vector<18x64xf32>
    %c0_1 = arith.constant 0 : index
    %c0_2 = arith.constant 0 : index
    %c0_3 = arith.constant 0 : index
    %6 = vector.load %arg3[%c0_1, %c0_2, %c0_3] : memref<3x64x64xf32, #tpu.memory_space<vmem>>, vector<1x64x64xf32>
    %7 = vector.shape_cast %6 : vector<1x64x64xf32> to vector<64x64xf32>
    %cst_4 = arith.constant dense<0.000000e+00> : vector<18x64xf32>
    %8 = tpu.matmul %5, %7, %cst_4 {dimension_numbers = #tpu.dot_dimension_numbers<[1], [0], [0], [1], [0, 0, 1, 1], [], []>} : vector<18x64xf32>, vector<64x64xf32>, vector<18x64xf32> -> vector<18x64xf32>
    %9 = arith.addf %1, %8 : vector<18x64xf32>
    %c1_i32 = arith.constant 1 : i32
    %10 = arith.addi %0, %c1_i32 : i32
    %c0_5 = arith.constant 0 : index
    %11 = arith.index_cast %10 : i32 to index
    %c0_6 = arith.constant 0 : index
    %12 = vector.load %arg2[%c0_5, %11, %c0_6] : memref<1x20x64xf32, #tpu.memory_space<vmem>>, vector<1x18x64xf32>
    %13 = vector.shape_cast %12 : vector<1x18x64xf32> to vector<18x64xf32>
    %c1 = arith.constant 1 : index
    %c0_7 = arith.constant 0 : index
    %c0_8 = arith.constant 0 : index
    %14 = vector.load %arg3[%c1, %c0_7, %c0_8] : memref<3x64x64xf32, #tpu.memory_space<vmem>>, vector<1x64x64xf32>
    %15 = vector.shape_cast %14 : vector<1x64x64xf32> to vector<64x64xf32>
    %cst_9 = arith.constant dense<0.000000e+00> : vector<18x64xf32>
    %16 = tpu.matmul %13, %15, %cst_9 {dimension_numbers = #tpu.dot_dimension_numbers<[1], [0], [0], [1], [0, 0, 1, 1], [], []>} : vector<18x64xf32>, vector<64x64xf32>, vector<18x64xf32> -> vector<18x64xf32>
    %17 = arith.addf %9, %16 : vector<18x64xf32>
    %c2_i32 = arith.constant 2 : i32
    %18 = arith.addi %0, %c2_i32 : i32
    %c0_10 = arith.constant 0 : index
    %19 = arith.index_cast %18 : i32 to index
    %c0_11 = arith.constant 0 : index
    %20 = vector.load %arg2[%c0_10, %19, %c0_11] : memref<1x20x64xf32, #tpu.memory_space<vmem>>, vector<1x18x64xf32>
    %21 = vector.shape_cast %20 : vector<1x18x64xf32> to vector<18x64xf32>
    %c2 = arith.constant 2 : index
    %c0_12 = arith.constant 0 : index
    %c0_13 = arith.constant 0 : index
    %22 = vector.load %arg3[%c2, %c0_12, %c0_13] : memref<3x64x64xf32, #tpu.memory_space<vmem>>, vector<1x64x64xf32>
    %23 = vector.shape_cast %22 : vector<1x64x64xf32> to vector<64x64xf32>
    %cst_14 = arith.constant dense<0.000000e+00> : vector<18x64xf32>
    %24 = tpu.matmul %21, %23, %cst_14 {dimension_numbers = #tpu.dot_dimension_numbers<[1], [0], [0], [1], [0, 0, 1, 1], [], []>} : vector<18x64xf32>, vector<64x64xf32>, vector<18x64xf32> -> vector<18x64xf32>
    %25 = arith.addf %17, %24 : vector<18x64xf32>
    %cst_15 = arith.constant 0.000000e+00 : f32
    %26 = vector.broadcast %cst_15 : f32 to vector<18x64xf32>
    %27 = arith.maximumf %25, %26 : vector<18x64xf32>
    %28 = tpu.iota {dimensions = array<i32: 0>} : vector<18x1xi32>
    %c1_i32_16 = arith.constant 1 : i32
    %29 = arith.subi %0, %c1_i32_16 : i32
    %30 = vector.broadcast %29 : i32 to vector<18x1xi32>
    %31 = arith.addi %28, %30 : vector<18x1xi32>
    %c0_i32_17 = arith.constant 0 : i32
    %32 = vector.broadcast %c0_i32_17 : i32 to vector<18x1xi32>
    %33 = arith.cmpi sge, %31, %32 : vector<18x1xi32>
    %c16_i32_18 = arith.constant 16 : i32
    %34 = vector.broadcast %c16_i32_18 : i32 to vector<18x1xi32>
    %35 = arith.cmpi slt, %31, %34 : vector<18x1xi32>
    %36 = arith.andi %33, %35 : vector<18x1xi1>
    %cst_19 = arith.constant 0.000000e+00 : f32
    %37 = vector.shape_cast %36 : vector<18x1xi1> to vector<18x1xi1>
    %38 = vector.broadcast %37 : vector<18x1xi1> to vector<18x64xi1>
    %39 = vector.broadcast %cst_19 : f32 to vector<18x64xf32>
    %40 = arith.select %38, %27, %39 : vector<18x64xi1>, vector<18x64xf32>
    %cst_20 = arith.constant 0.000000e+00 : f32
    %41 = vector.broadcast %cst_20 : f32 to vector<16x64xf32>
    %42 = vector.extract_strided_slice %40 {offsets = [0, 0], sizes = [16, 64], strides = [1, 1]} : vector<18x64xf32> to vector<16x64xf32>
    %c0_21 = arith.constant 0 : index
    %c0_22 = arith.constant 0 : index
    %c0_23 = arith.constant 0 : index
    %43 = vector.load %arg4[%c0_21, %c0_22, %c0_23] : memref<3x64x64xf32, #tpu.memory_space<vmem>>, vector<1x64x64xf32>
    %44 = vector.shape_cast %43 : vector<1x64x64xf32> to vector<64x64xf32>
    %cst_24 = arith.constant dense<0.000000e+00> : vector<16x64xf32>
    %45 = tpu.matmul %42, %44, %cst_24 {dimension_numbers = #tpu.dot_dimension_numbers<[1], [0], [0], [1], [0, 0, 1, 1], [], []>} : vector<16x64xf32>, vector<64x64xf32>, vector<16x64xf32> -> vector<16x64xf32>
    %46 = arith.addf %41, %45 : vector<16x64xf32>
    %47 = vector.extract_strided_slice %40 {offsets = [1, 0], sizes = [16, 64], strides = [1, 1]} : vector<18x64xf32> to vector<16x64xf32>
    %c1_25 = arith.constant 1 : index
    %c0_26 = arith.constant 0 : index
    %c0_27 = arith.constant 0 : index
    %48 = vector.load %arg4[%c1_25, %c0_26, %c0_27] : memref<3x64x64xf32, #tpu.memory_space<vmem>>, vector<1x64x64xf32>
    %49 = vector.shape_cast %48 : vector<1x64x64xf32> to vector<64x64xf32>
    %cst_28 = arith.constant dense<0.000000e+00> : vector<16x64xf32>
    %50 = tpu.matmul %47, %49, %cst_28 {dimension_numbers = #tpu.dot_dimension_numbers<[1], [0], [0], [1], [0, 0, 1, 1], [], []>} : vector<16x64xf32>, vector<64x64xf32>, vector<16x64xf32> -> vector<16x64xf32>
    %51 = arith.addf %46, %50 : vector<16x64xf32>
    %52 = vector.extract_strided_slice %40 {offsets = [2, 0], sizes = [16, 64], strides = [1, 1]} : vector<18x64xf32> to vector<16x64xf32>
    %c2_29 = arith.constant 2 : index
    %c0_30 = arith.constant 0 : index
    %c0_31 = arith.constant 0 : index
    %53 = vector.load %arg4[%c2_29, %c0_30, %c0_31] : memref<3x64x64xf32, #tpu.memory_space<vmem>>, vector<1x64x64xf32>
    %54 = vector.shape_cast %53 : vector<1x64x64xf32> to vector<64x64xf32>
    %cst_32 = arith.constant dense<0.000000e+00> : vector<16x64xf32>
    %55 = tpu.matmul %52, %54, %cst_32 {dimension_numbers = #tpu.dot_dimension_numbers<[1], [0], [0], [1], [0, 0, 1, 1], [], []>} : vector<16x64xf32>, vector<64x64xf32>, vector<16x64xf32> -> vector<16x64xf32>
    %56 = arith.addf %51, %55 : vector<16x64xf32>
    %c2_i32_33 = arith.constant 2 : i32
    %57 = arith.addi %0, %c2_i32_33 : i32
    %c0_34 = arith.constant 0 : index
    %58 = arith.index_cast %57 : i32 to index
    %c0_35 = arith.constant 0 : index
    %59 = vector.load %arg2[%c0_34, %58, %c0_35] : memref<1x20x64xf32, #tpu.memory_space<vmem>>, vector<1x16x64xf32>
    %60 = vector.shape_cast %59 : vector<1x16x64xf32> to vector<16x64xf32>
    %61 = arith.addf %56, %60 : vector<16x64xf32>
    %cst_36 = arith.constant 0.000000e+00 : f32
    %62 = vector.broadcast %cst_36 : f32 to vector<16x64xf32>
    %63 = arith.maximumf %61, %62 : vector<16x64xf32>
    %c0_37 = arith.constant 0 : index
    %c0_38 = arith.constant 0 : index
    %c0_39 = arith.constant 0 : index
    %64 = vector.load %arg5[%c0_37, %c0_38, %c0_39] : memref<1x16x64xf32, #tpu.memory_space<vmem>>, vector<1x16x64xf32>
    %65 = vector.shape_cast %64 : vector<1x16x64xf32> to vector<16x64xf32>
    %66 = vector.shape_cast %63 : vector<16x64xf32> to vector<1x16x64xf32>
    tpu.vector_store %arg5[%c0_37, %c0_38, %c0_39], %66 {strides = array<i32>} : memref<1x16x64xf32, #tpu.memory_space<vmem>>, vector<1x16x64xf32>,
    return
  }
  func.func @transform_0(%arg0: i32, %arg1: i32) -> (i32, i32, i32) {
    %c0_i32 = arith.constant 0 : i32
    %c0_i32_0 = arith.constant 0 : i32
    %c0_i32_1 = arith.constant 0 : i32
    return %arg0, %c0_i32, %c0_i32_0 : i32, i32, i32
  }
  func.func @transform_1(%arg0: i32, %arg1: i32) -> (i32, i32, i32) {
    %c0_i32 = arith.constant 0 : i32
    %c0_i32_0 = arith.constant 0 : i32
    %c0_i32_1 = arith.constant 0 : i32
    %c0_i32_2 = arith.constant 0 : i32
    return %c0_i32, %c0_i32_0, %c0_i32_1 : i32, i32, i32
  }
  func.func @transform_2(%arg0: i32, %arg1: i32) -> (i32, i32, i32) {
    %c0_i32 = arith.constant 0 : i32
    %c0_i32_0 = arith.constant 0 : i32
    %c0_i32_1 = arith.constant 0 : i32
    %c0_i32_2 = arith.constant 0 : i32
    return %c0_i32, %c0_i32_0, %c0_i32_1 : i32, i32, i32
  }
  func.func @transform_3(%arg0: i32, %arg1: i32) -> (i32, i32, i32) {
    %c0_i32 = arith.constant 0 : i32
    %c0_i32_0 = arith.constant 0 : i32
    return %arg0, %arg1, %c0_i32 : i32, i32, i32
  }
}

</mosaic_0001>

<llo_original>
// kernel: block2_forward.1
$region0: #{block2_forward.1}
  #allocation0 [shape = 'u32[]', space=smem, size = 0x4, offset = 0x4, fixed_abs, tag = 'smem constant byte address 0x4 - core index']
  #allocation1 [shape = 'u32[144,128]{1,0:T(1,128)}', space=vmem, size = 0x12000, scoped, tag = 'internal scratch']
  %s0 = inlined_call_operand.vmem [shape: f32[2,20,64], index: 0, kind: input, shape index: {}]
  %s1 = inlined_call_operand.vmem [shape: f32[3,64,64], index: 1, kind: input, shape index: {}]
  %s2 = inlined_call_operand.vmem [shape: f32[3,64,64], index: 2, kind: input, shape index: {}]
  %s3 = inlined_call_operand.vmem [shape: f32[2,16,64], index: 3, kind: output, shape index: {}]
  %s4 = sld [smem:[#allocation0]]
  $region45: #{block2_forward.1} parent=0
    _
  %s6 = ssub.s32 1, %s4
  %s7 = scalar_select 0, %s6, %s4
  loop: start=0, step=1, limit=4
  $region2: #{block2_forward.1} parent=0 // loop_pre_header
    _
  $region3: #{block2_forward.1} parent=0 // loop_header
    %s9 = sphi 0, %s13
    %p10 = scmp.ge.s32.totalorder %s9, 4
    %s16 = sphi 0, %s28
    %s17 = sphi 0, %s24
    %s18 = sphi 0, %s16
    %s19 = sphi 0, %s17
    %s20 = sphi 0, %s18
    %s21 = sphi 0, %s19
    %s31 = sphi 0, %s33
    %s34 = sphi 0, %s31
    %s35 = sphi 0, %s34
    %s51 = sphi 0, %s35
    %s55 = sphi 0, %s55
    %s57 = sphi 0, %s55
    %s58 = sphi 0, %s57
    %s72 = sphi 0, %s58
    %s76 = sphi 0, %s76
    %s78 = sphi 0, %s76
    %s79 = sphi 0, %s78
    %s93 = sphi 0, %s79
    %s101 = sphi 0, %s103
    %s104 = sphi 0, %s101
    %s105 = sphi 0, %s104
    %s121 = sphi 0, %s105
  $region4: #{block2_forward.1} parent=0 // loop_header_branch
    %12 = sbr.rel (%p10) target = $region8
  $region5: #{block2_forward.1} parent=0 // loop_body
    %s14 = ssub.s32 %s9, 1
    %s15 = ssub.s32 %s9, 2
    %s22 = sadd.s32 1, %s17
    %p23 = scmp.ge.s32.totalorder %s22, 1
    %s24 = scalar_select %p23, 0, %s22
    %s25 = sadd.s32 1, %s16
    %s26 = scalar_select %p23, %s25, %s16
    %p27 = scmp.ge.s32.totalorder %s26, 2
    %s28 = scalar_select %p27, 0, %s26
    %s29 = ssub.s32 %s16, %s28
    %p30 = scmp.eq.s32.totalorder %s29, 0
    %s32 = sadd.s32 %s31, 1
    %s33 = scalar_select %p30, %s31, %s32
    %p36 = pneg %p30
    %p37 = scmp.eq.s32.totalorder %s9, 1
    %p38 = por %p36, %p37
    %p39 = scmp.ne.s32.totalorder %s31, %s34
    %p40 = scmp.eq.s32.totalorder %s9, 0
    %p41 = por %p39, %p40
    %p42 = scmp.ne.s32.totalorder %s31, %s34
    %p43 = scmp.eq.s32.totalorder %s14, 1
    %p44 = por %p42, %p43
    %p45 = scmp.ne.s32.totalorder %s34, %s35
    %p46 = scmp.eq.s32.totalorder %s14, 0
    %p47 = por %p45, %p46
    %p48 = scmp.ne.s32.totalorder %s34, %s35
    %p49 = scmp.eq.s32.totalorder %s15, 1
    %p50 = por %p48, %p49
    %p52 = scmp.ne.s32.totalorder %s35, %s51
    %p53 = scmp.eq.s32.totalorder %s15, 0
    %p54 = por %p52, %p53
    %s56 = sadd.s32 %s55, 1
    %p59 = scmp.eq.s32.totalorder %s9, 1
    %p60 = scmp.ne.s32.totalorder %s55, %s57
    %p61 = scmp.eq.s32.totalorder %s9, 0
    %p62 = por %p60, %p61
    %p63 = scmp.ne.s32.totalorder %s55, %s57
    %p64 = scmp.eq.s32.totalorder %s14, 1
    %p65 = por %p63, %p64
    %p66 = scmp.ne.s32.totalorder %s57, %s58
    %p67 = scmp.eq.s32.totalorder %s14, 0
    %p68 = por %p66, %p67
    %p69 = scmp.ne.s32.totalorder %s57, %s58
    %p70 = scmp.eq.s32.totalorder %s15, 1
    %p71 = por %p69, %p70
    %p73 = scmp.ne.s32.totalorder %s58, %s72
    %p74 = scmp.eq.s32.totalorder %s15, 0
    %p75 = por %p73, %p74
    %s77 = sadd.s32 %s76, 1
    %p80 = scmp.eq.s32.totalorder %s9, 1
    %p81 = scmp.ne.s32.totalorder %s76, %s78
    %p82 = scmp.eq.s32.totalorder %s9, 0
    %p83 = por %p81, %p82
    %p84 = scmp.ne.s32.totalorder %s76, %s78
    %p85 = scmp.eq.s32.totalorder %s14, 1
    %p86 = por %p84, %p85
    %p87 = scmp.ne.s32.totalorder %s78, %s79
    %p88 = scmp.eq.s32.totalorder %s14, 0
    %p89 = por %p87, %p88
    %p90 = scmp.ne.s32.totalorder %s78, %s79
    %p91 = scmp.eq.s32.totalorder %s15, 1
    %p92 = por %p90, %p91
    %p94 = scmp.ne.s32.totalorder %s79, %s93
    %p95 = scmp.eq.s32.totalorder %s15, 0
    %p96 = por %p94, %p95
    %s97 = ssub.s32 %s16, %s28
    %s98 = ssub.s32 %s17, %s24
    %s99 = sor.u32 %s97, %s98
    %p100 = scmp.eq.s32.totalorder %s99, 0
    %s102 = sadd.s32 %s101, 1
    %s103 = scalar_select %p100, %s101, %s102
    %p106 = pneg %p100
    %p107 = scmp.eq.s32.totalorder %s9, 1
    %p108 = por %p106, %p107
    %p109 = scmp.ne.s32.totalorder %s101, %s104
    %p110 = scmp.eq.s32.totalorder %s9, 0
    %p111 = por %p109, %p110
    %p112 = scmp.ne.s32.totalorder %s101, %s104
    %p113 = scmp.eq.s32.totalorder %s14, 1
    %p114 = por %p112, %p113
    %p115 = scmp.ne.s32.totalorder %s104, %s105
    %p116 = scmp.eq.s32.totalorder %s14, 0
    %p117 = por %p115, %p116
    %p118 = scmp.ne.s32.totalorder %s104, %s105
    %p119 = scmp.eq.s32.totalorder %s15, 1
    %p120 = por %p118, %p119
    %p122 = scmp.ne.s32.totalorder %s105, %s121
    %p123 = scmp.eq.s32.totalorder %s15, 0
    %p124 = por %p122, %p123
    %p125 = scmp.le.s32.totalorder 1, %s9
    %p126 = scmp.lt.s32.totalorder %s9, 3
    %p127 = pnand %p125, %p126
    %p128 = pneg %p127
    // Predicated region
    $region9: #{block2_forward.1} parent=5 // pred_check
      _
    $region10: #{block2_forward.1} parent=5 // pred_check_branch
      %130 = sbr.rel (%p127) target = $region12
    $region11: #{block2_forward.1} parent=5 // pred_region
      %s131 = ssub.s32 %s9, 1
      // Predicated region
      $region13: #{block2_forward.1} parent=11 // pred_check
        %p132 = pneg %p68
      $region14: #{block2_forward.1} parent=11 // pred_check_branch
        %134 = sbr.rel (%p132) target = $region16
      $region15: #{block2_forward.1} parent=11 // pred_region
        _
      $region16: #{block2_forward.1} parent=11 // pred_fallthru
        _
      // Predicated region
      $region17: #{block2_forward.1} parent=11 // pred_check
        %p135 = pneg %p89
      $region18: #{block2_forward.1} parent=11 // pred_check_branch
        %137 = sbr.rel (%p135) target = $region20
      $region19: #{block2_forward.1} parent=11 // pred_region
        _
      $region20: #{block2_forward.1} parent=11 // pred_fallthru
        _
    $region12: #{block2_forward.1} parent=5 // pred_fallthru
      _
    %p138 = scmp.lt.s32.totalorder %s9, 2
    // Predicated region
    $region21: #{block2_forward.1} parent=5 // pred_check
      %p139 = pneg %p138
    $region22: #{block2_forward.1} parent=5 // pred_check_branch
      %141 = sbr.rel (%p139) target = $region24
    $region23: #{block2_forward.1} parent=5 // pred_region
      // Predicated region
      $region25: #{block2_forward.1} parent=23 // pred_check
        %p142 = pneg %p41
      $region26: #{block2_forward.1} parent=23 // pred_check_branch
        %144 = sbr.rel (%p142) target = $region28
      $region27: #{block2_forward.1} parent=23 // pred_region
        %p145 = scmp.lt.s32.totalorder %s16, 1
        %s146 = scalar_select %p145, %s16, 1
        %s147 = smul.addr %s146, 3
        %s148 = smul.addr %s147, 8
        %s149 = scalar_lea.vmem %s0, %s148
      $region28: #{block2_forward.1} parent=23 // pred_fallthru
        _
    $region24: #{block2_forward.1} parent=5 // pred_fallthru
      _
    %p150 = scmp.le.s32.totalorder 1, %s9
    %p151 = scmp.lt.s32.totalorder %s9, 3
    %p152 = pnand %p150, %p151
    %p153 = pneg %p152
    // Predicated region
    $region29: #{block2_forward.1} parent=5 // pred_check
      _
    $region30: #{block2_forward.1} parent=5 // pred_check_branch
      %155 = sbr.rel (%p152) target = $region32
    $region31: #{block2_forward.1} parent=5 // pred_region
      %s156 = ssub.s32 %s9, 1
      %p157 = scmp.lt.s32.totalorder %s18, 1
      %s158 = scalar_select %p157, %s18, 1
      %s159 = smul.addr %s158, 3
      %s160 = smul.addr %s159, 8
      %s161 = scalar_lea.vmem %s0, %s160
      %p162 = pneg %p47
      %p163 = pneg %p44
      %p164 = pneg %p68
      %p165 = pneg %p65
      %p166 = pneg %p89
      %p167 = pneg %p86
      %p168 = pneg %p117
      %p169 = pneg %p114
      %s170 = smul.u32 2, %s19
      %p171 = scmp.lt.s32.totalorder %s18, 1
      %s172 = scalar_select %p171, %s18, 1
      %p173 = scmp.lt.s32.totalorder %s170, 1
      %s174 = scalar_select %p173, %s170, 1
      %s175 = smul.addr %s172, 2
      %s176 = sadd.s32 %s174, %s175
      %s177 = smul.addr %s176, 8
      %s178 = scalar_lea.vmem %s3, %s177
      %p179 = scmp.lt.s32.totalorder %s18, 1
      %s180 = scalar_select %p179, %s18, 1
      %s181 = smul.addr %s180, 3
      %s182 = smul.addr %s181, 8
      %s183 = scalar_lea.vmem %s0, %s182
      %s184 = smul.u32 2, %s19
      %p185 = scmp.lt.s32.totalorder %s18, 1
      %s186 = scalar_select %p185, %s18, 1
      %p187 = scmp.lt.s32.totalorder %s184, 1
      %s188 = scalar_select %p187, %s184, 1
      %s189 = smul.addr %s186, 2
      %s190 = sadd.s32 %s188, %s189
      %s191 = smul.addr %s190, 8
      %s192 = scalar_lea.vmem %s3, %s191
      %s193 = smul.u32 2, %s19
      %s194 = smul.u32 %s19, 16
      %s195 = scalar_lea.vmem %s183, %s194
      %v196 = vld [vmem:[%s195] sm:$0xff]
      %v197 = vld [vmem:[%s195 + $0x8] sm:$0xff]
      %v198 = vld [vmem:[%s195 + $0x10] sm:$0x3]
      %v199 = vld [vmem:[%s1] sm:$0xff]
      %v200 = vld [vmem:[%s1 + $0x8] sm:$0xff]
      %v201 = vld [vmem:[%s1 + $0x10] sm:$0xff]
      %v202 = vld [vmem:[%s1 + $0x18] sm:$0xff]
      %v203 = vld [vmem:[%s1 + $0x20] sm:$0xff]
      %v204 = vld [vmem:[%s1 + $0x28] sm:$0xff]
      %v205 = vld [vmem:[%s1 + $0x30] sm:$0xff]
      %v206 = vld [vmem:[%s1 + $0x38] sm:$0xff]
      %s207 = sadd.s32 %s194, 1
      %s208 = scalar_lea.vmem %s183, %s207
      %v209 = vld [vmem:[%s208] sm:$0xff]
      %v210 = vld [vmem:[%s208 + $0x8] sm:$0xff]
      %v211 = vld [vmem:[%s208 + $0x10] sm:$0x3]
      %s212 = scalar_lea.vmem %s1, 64
      %v213 = vld [vmem:[%s212] sm:$0xff]
      %v214 = vld [vmem:[%s212 + $0x8] sm:$0xff]
      %v215 = vld [vmem:[%s212 + $0x10] sm:$0xff]
      %v216 = vld [vmem:[%s212 + $0x18] sm:$0xff]
      %v217 = vld [vmem:[%s212 + $0x20] sm:$0xff]
      %v218 = vld [vmem:[%s212 + $0x28] sm:$0xff]
      %v219 = vld [vmem:[%s212 + $0x30] sm:$0xff]
      %v220 = vld [vmem:[%s212 + $0x38] sm:$0xff]
      %vm221 = vcmask 523264
      %v223 = vsel %vm221, %v209, 0
      %v226 = vsel %vm221, %v210, 0
      %v229 = vsel %vm221, %v211, 0
      %231 = vmatprep.subr.mxu0 0.0
      %232 = vmatpush1.msra.mxu0 %v213
      %233 = vmatprep.subr.mxu0 0.0
      %234 = vmatpush1.msra.mxu0 %v214
      %235 = vmatprep.subr.mxu0 0.0
      %236 = vmatpush1.msra.mxu0 %v215
      %237 = vmatprep.subr.mxu0 0.0
      %238 = vmatpush1.msra.mxu0 %v216
      %239 = vmatprep.subr.mxu0 0.0
      %240 = vmatpush1.msra.mxu0 %v217
      %241 = vmatprep.subr.mxu0 0.0
      %242 = vmatpush1.msra.mxu0 %v218
      %243 = vmatprep.subr.mxu0 0.0
      %244 = vmatpush1.msra.mxu0 %v219
      %245 = vmatprep.subr.mxu0 0.0
      %246 = vmatpush1.msra.mxu0 %v220
      %247 = vmatprep.subr.mxu0 0.0
      %248 = vmatpush1.msra.mxu0 0.0
      %249 = vmatprep.subr.mxu0 0.0
      %250 = vmatpush1.msra.mxu0 0.0
      %251 = vmatprep.subr.mxu0 0.0
      %252 = vmatpush1.msra.mxu0 0.0
      %253 = vmatprep.subr.mxu0 0.0
      %254 = vmatpush1.msra.mxu0 0.0
      %255 = vmatprep.subr.mxu0 0.0
      %256 = vmatpush1.msra.mxu0 0.0
      %257 = vmatprep.subr.mxu0 0.0
      %258 = vmatpush1.msra.mxu0 0.0
      %259 = vmatprep.subr.mxu0 0.0
      %260 = vmatpush1.msra.mxu0 0.0
      %261 = vmatprep.subr.mxu0 0.0
      %262 = vmatpush1.msra.mxu0 0.0
      %263 = vmatprep.subr.mxu0 0.0
      %264 = vmatpush1.msra.mxu0 0.0
      %265 = vmatprep.subr.mxu0 0.0
      %266 = vmatpush1.msra.mxu0 0.0
      %267 = vmatprep.subr.mxu0 0.0
      %268 = vmatpush1.msra.mxu0 0.0
      %269 = vmatprep.subr.mxu0 0.0
      %270 = vmatpush1.msra.mxu0 0.0
      %271 = vmatprep.subr.mxu0 0.0
      %272 = vmatpush1.msra.mxu0 0.0
      %273 = vmatprep.subr.mxu0 0.0
      %274 = vmatpush1.msra.mxu0 0.0
      %275 = vmatprep.subr.mxu0 0.0
      %276 = vmatpush1.msra.mxu0 0.0
      %277 = vmatprep.subr.mxu0 0.0
      %278 = vmatpush1.msra.mxu0 0.0
      %279 = vmatprep.subr.mxu0 0.0
      %280 = vmatpush1.msra.mxu0 0.0
      %281 = vmatprep.subr.mxu0 0.0
      %282 = vmatpush1.msra.mxu0 0.0
      %283 = vmatprep.subr.mxu0 0.0
      %284 = vmatpush1.msra.mxu0 0.0
      %285 = vmatprep.subr.mxu0 0.0
      %286 = vmatpush1.msra.mxu0 0.0
      %287 = vmatprep.subr.mxu0 0.0
      %288 = vmatpush1.msra.mxu0 0.0
      %289 = vmatprep.subr.mxu0 0.0
      %290 = vmatpush1.msra.mxu0 0.0
      %291 = vmatprep.subr.mxu0 0.0
      %292 = vmatpush1.msra.mxu0 0.0
      %293 = vmatprep.subr.mxu0 0.0
      %294 = vmatpush1.msra.mxu0 0.0
      %295 = vmatprep.mubr.f32.mxu0 0.0
      %296 = vmatmul.mubr.f32.gmra.mrb[0].mxu0 %v223
      %v297 = vpop.f32.mrb[0].mxu0
      %v298 = vadd.f32 0.0, %v297
      %v299 = vpop.f32.mrb[0].mxu0
      %300 = vmatprep.mubr.f32.mxu0 0.0
      %301 = vmatmul.mubr.f32.gmra.mrb[0].mxu0 %v226
      %v302 = vpop.f32.mrb[0].mxu0
      %v303 = vadd.f32 0.0, %v302
      %v304 = vpop.f32.mrb[0].mxu0
      %305 = vmatprep.mubr.f32.mxu0 0.0
      %306 = vmatmul.mubr.f32.gmra.mrb[0].mxu0 %v229
      %v307 = vpop.f32.mrb[0].mxu0
      %v308 = vadd.f32 0.0, %v307
      %v309 = vpop.f32.mrb[0].mxu0
      %310 = vdwg.mxu0
      %v312 = vsel %vm221, %v196, 0
      %v315 = vsel %vm221, %v197, 0
      %v318 = vsel %vm221, %v198, 0
      %320 = vmatprep.subr.mxu0 0.0
      %321 = vmatpush1.msra.mxu0 %v199
      %322 = vmatprep.subr.mxu0 0.0
      %323 = vmatpush1.msra.mxu0 %v200
      %324 = vmatprep.subr.mxu0 0.0
      %325 = vmatpush1.msra.mxu0 %v201
      %326 = vmatprep.subr.mxu0 0.0
      %327 = vmatpush1.msra.mxu0 %v202
      %328 = vmatprep.subr.mxu0 0.0
      %329 = vmatpush1.msra.mxu0 %v203
      %330 = vmatprep.subr.mxu0 0.0
      %331 = vmatpush1.msra.mxu0 %v204
      %332 = vmatprep.subr.mxu0 0.0
      %333 = vmatpush1.msra.mxu0 %v205
      %334 = vmatprep.subr.mxu0 0.0
      %335 = vmatpush1.msra.mxu0 %v206
      %336 = vmatprep.subr.mxu0 0.0
      %337 = vmatpush1.msra.mxu0 0.0
      %338 = vmatprep.subr.mxu0 0.0
      %339 = vmatpush1.msra.mxu0 0.0
      %340 = vmatprep.subr.mxu0 0.0
      %341 = vmatpush1.msra.mxu0 0.0
      %342 = vmatprep.subr.mxu0 0.0
      %343 = vmatpush1.msra.mxu0 0.0
      %344 = vmatprep.subr.mxu0 0.0
      %345 = vmatpush1.msra.mxu0 0.0
      %346 = vmatprep.subr.mxu0 0.0
      %347 = vmatpush1.msra.mxu0 0.0
      %348 = vmatprep.subr.mxu0 0.0
      %349 = vmatpush1.msra.mxu0 0.0
      %350 = vmatprep.subr.mxu0 0.0
      %351 = vmatpush1.msra.mxu0 0.0
      %352 = vmatprep.subr.mxu0 0.0
      %353 = vmatpush1.msra.mxu0 0.0
      %354 = vmatprep.subr.mxu0 0.0
      %355 = vmatpush1.msra.mxu0 0.0
      %356 = vmatprep.subr.mxu0 0.0
      %357 = vmatpush1.msra.mxu0 0.0
      %358 = vmatprep.subr.mxu0 0.0
      %359 = vmatpush1.msra.mxu0 0.0
      %360 = vmatprep.subr.mxu0 0.0
      %361 = vmatpush1.msra.mxu0 0.0
      %362 = vmatprep.subr.mxu0 0.0
      %363 = vmatpush1.msra.mxu0 0.0
      %364 = vmatprep.subr.mxu0 0.0
      %365 = vmatpush1.msra.mxu0 0.0
      %366 = vmatprep.subr.mxu0 0.0
      %367 = vmatpush1.msra.mxu0 0.0
      %368 = vmatprep.subr.mxu0 0.0
      %369 = vmatpush1.msra.mxu0 0.0
      %370 = vmatprep.subr.mxu0 0.0
      %371 = vmatpush1.msra.mxu0 0.0
      %372 = vmatprep.subr.mxu0 0.0
      %373 = vmatpush1.msra.mxu0 0.0
      %374 = vmatprep.subr.mxu0 0.0
      %375 = vmatpush1.msra.mxu0 0.0
      %376 = vmatprep.subr.mxu0 0.0
      %377 = vmatpush1.msra.mxu0 0.0
      %378 = vmatprep.subr.mxu0 0.0
      %379 = vmatpush1.msra.mxu0 0.0
      %380 = vmatprep.subr.mxu0 0.0
      %381 = vmatpush1.msra.mxu0 0.0
      %382 = vmatprep.subr.mxu0 0.0
      %383 = vmatpush1.msra.mxu0 0.0
      %384 = vmatprep.mubr.f32.mxu0 0.0
      %385 = vmatmul.mubr.f32.gmra.mrb[0].mxu0 %v312
      %v386 = vpop.f32.mrb[0].mxu0
      %v387 = vadd.f32 %v298, %v386
      %v388 = vpop.f32.mrb[0].mxu0
      %389 = vmatprep.mubr.f32.mxu0 0.0
      %390 = vmatmul.mubr.f32.gmra.mrb[0].mxu0 %v315
      %v391 = vpop.f32.mrb[0].mxu0
      %v392 = vadd.f32 %v303, %v391
      %v393 = vpop.f32.mrb[0].mxu0
      %394 = vmatprep.mubr.f32.mxu0 0.0
      %395 = vmatmul.mubr.f32.gmra.mrb[0].mxu0 %v318
      %v396 = vpop.f32.mrb[0].mxu0
      %v397 = vadd.f32 %v308, %v396
      %v398 = vpop.f32.mrb[0].mxu0
      %399 = vdwg.mxu0
      %s400 = sadd.s32 %s194, 2
      %s401 = scalar_lea.vmem %s183, %s400
      %v402 = vld [vmem:[%s401] sm:$0xff]
      %v403 = vld [vmem:[%s401 + $0x8] sm:$0xff]
      %v404 = vld [vmem:[%s401 + $0x10] sm:$0x3]
      %s405 = scalar_lea.vmem %s1, 128
      %v406 = vld [vmem:[%s405] sm:$0xff]
      %v407 = vld [vmem:[%s405 + $0x8] sm:$0xff]
      %v408 = vld [vmem:[%s405 + $0x10] sm:$0xff]
      %v409 = vld [vmem:[%s405 + $0x18] sm:$0xff]
      %v410 = vld [vmem:[%s405 + $0x20] sm:$0xff]
      %v411 = vld [vmem:[%s405 + $0x28] sm:$0xff]
      %v412 = vld [vmem:[%s405 + $0x30] sm:$0xff]
      %v413 = vld [vmem:[%s405 + $0x38] sm:$0xff]
      %v415 = vsel %vm221, %v402, 0
      %v418 = vsel %vm221, %v403, 0
      %v421 = vsel %vm221, %v404, 0
      %423 = vmatprep.subr.mxu0 0.0
      %424 = vmatpush1.msra.mxu0 %v406
      %425 = vmatprep.subr.mxu0 0.0
      %426 = vmatpush1.msra.mxu0 %v407
      %427 = vmatprep.subr.mxu0 0.0
      %428 = vmatpush1.msra.mxu0 %v408
      %429 = vmatprep.subr.mxu0 0.0
      %430 = vmatpush1.msra.mxu0 %v409
      %431 = vmatprep.subr.mxu0 0.0
      %432 = vmatpush1.msra.mxu0 %v410
      %433 = vmatprep.subr.mxu0 0.0
      %434 = vmatpush1.msra.mxu0 %v411
      %435 = vmatprep.subr.mxu0 0.0
      %436 = vmatpush1.msra.mxu0 %v412
      %437 = vmatprep.subr.mxu0 0.0
      %438 = vmatpush1.msra.mxu0 %v413
      %439 = vmatprep.subr.mxu0 0.0
      %440 = vmatpush1.msra.mxu0 0.0
      %441 = vmatprep.subr.mxu0 0.0
      %442 = vmatpush1.msra.mxu0 0.0
      %443 = vmatprep.subr.mxu0 0.0
      %444 = vmatpush1.msra.mxu0 0.0
      %445 = vmatprep.subr.mxu0 0.0
      %446 = vmatpush1.msra.mxu0 0.0
      %447 = vmatprep.subr.mxu0 0.0
      %448 = vmatpush1.msra.mxu0 0.0
      %449 = vmatprep.subr.mxu0 0.0
      %450 = vmatpush1.msra.mxu0 0.0
      %451 = vmatprep.subr.mxu0 0.0
      %452 = vmatpush1.msra.mxu0 0.0
      %453 = vmatprep.subr.mxu0 0.0
      %454 = vmatpush1.msra.mxu0 0.0
      %455 = vmatprep.subr.mxu0 0.0
      %456 = vmatpush1.msra.mxu0 0.0
      %457 = vmatprep.subr.mxu0 0.0
      %458 = vmatpush1.msra.mxu0 0.0
      %459 = vmatprep.subr.mxu0 0.0
      %460 = vmatpush1.msra.mxu0 0.0
      %461 = vmatprep.subr.mxu0 0.0
      %462 = vmatpush1.msra.mxu0 0.0
      %463 = vmatprep.subr.mxu0 0.0
      %464 = vmatpush1.msra.mxu0 0.0
      %465 = vmatprep.subr.mxu0 0.0
      %466 = vmatpush1.msra.mxu0 0.0
      %467 = vmatprep.subr.mxu0 0.0
      %468 = vmatpush1.msra.mxu0 0.0
      %469 = vmatprep.subr.mxu0 0.0
      %470 = vmatpush1.msra.mxu0 0.0
      %471 = vmatprep.subr.mxu0 0.0
      %472 = vmatpush1.msra.mxu0 0.0
      %473 = vmatprep.subr.mxu0 0.0
      %474 = vmatpush1.msra.mxu0 0.0
      %475 = vmatprep.subr.mxu0 0.0
      %476 = vmatpush1.msra.mxu0 0.0
      %477 = vmatprep.subr.mxu0 0.0
      %478 = vmatpush1.msra.mxu0 0.0
      %479 = vmatprep.subr.mxu0 0.0
      %480 = vmatpush1.msra.mxu0 0.0
      %481 = vmatprep.subr.mxu0 0.0
      %482 = vmatpush1.msra.mxu0 0.0
      %483 = vmatprep.subr.mxu0 0.0
      %484 = vmatpush1.msra.mxu0 0.0
      %485 = vmatprep.subr.mxu0 0.0
      %486 = vmatpush1.msra.mxu0 0.0
      %487 = vmatprep.mubr.f32.mxu0 0.0
      %488 = vmatmul.mubr.f32.gmra.mrb[0].mxu0 %v415
      %v489 = vpop.f32.mrb[0].mxu0
      %v490 = vadd.f32 0.0, %v489
      %v491 = vpop.f32.mrb[0].mxu0
      %492 = vmatprep.mubr.f32.mxu0 0.0
      %493 = vmatmul.mubr.f32.gmra.mrb[0].mxu0 %v418
      %v494 = vpop.f32.mrb[0].mxu0
      %v495 = vadd.f32 0.0, %v494
      %v496 = vpop.f32.mrb[0].mxu0
      %497 = vmatprep.mubr.f32.mxu0 0.0
      %498 = vmatmul.mubr.f32.gmra.mrb[0].mxu0 %v421
      %v499 = vpop.f32.mrb[0].mxu0
      %v500 = vadd.f32 0.0, %v499
      %v501 = vpop.f32.mrb[0].mxu0
      %502 = vdwg.mxu0
      %v503 = vadd.f32 %v387, %v490
      %v504 = vadd.f32 %v392, %v495
      %v505 = vadd.f32 %v397, %v500
      %v506 = vmax.f32 %v503, 0.0
      %v507 = vmax.f32 %v504, 0.0
      %v508 = vmax.f32 %v505, 0.0
      %v509 = vlaneseq
      %v510 = vshrl.u32 %v509, 7
      %v511 = vadd.s32 %v510, 8
      %v512 = vadd.s32 %v510, 16
      %s513 = ssub.s32 %s194, 1
      %v514 = vstv %s513
      %v515 = vadd.s32 %v510, %v514
      %v516 = vadd.s32 %v511, %v514
      %v517 = vadd.s32 %v512, %v514
      %vm518 = vcmp.ge.s32.totalorder %v515, 0
      %vm519 = vcmp.ge.s32.totalorder %v516, 0
      %vm520 = vcmp.ge.s32.totalorder %v517, 0
      %vm521 = vcmp.lt.s32.totalorder %v515, 16
      %vm522 = vcmp.lt.s32.totalorder %v516, 16
      %vm523 = vcmp.lt.s32.totalorder %v517, 16
      %vm524 = vmand %vm518, %vm521
      %vm525 = vmand %vm519, %vm522
      %vm526 = vmand %vm520, %vm523
      %v527 = vsel %vm524, 1, 0
      %v528 = vsel %vm525, 1, 0
      %v529 = vsel %vm526, 1, 0
      %vm530 = vcmp.eq.s32.totalorder %v527, 1
      %vm531 = vcmp.eq.s32.totalorder %v528, 1
      %vm532 = vcmp.eq.s32.totalorder %v529, 1
      %v533 = vsel %vm530, %v506, 0.0
      %v534 = vsel %vm531, %v507, 0.0
      %v535 = vsel %vm532, %v508, 0.0
      %v536 = vld [vmem:[%s2] sm:$0xff]
      %v537 = vld [vmem:[%s2 + $0x8] sm:$0xff]
      %v538 = vld [vmem:[%s2 + $0x10] sm:$0xff]
      %v539 = vld [vmem:[%s2 + $0x18] sm:$0xff]
      %v540 = vld [vmem:[%s2 + $0x20] sm:$0xff]
      %v541 = vld [vmem:[%s2 + $0x28] sm:$0xff]
      %v542 = vld [vmem:[%s2 + $0x30] sm:$0xff]
      %v543 = vld [vmem:[%s2 + $0x38] sm:$0xff]
      %s544 = scalar_lea.vmem %s2, 64
      %v545 = vld [vmem:[%s544] sm:$0xff]
      %v546 = vld [vmem:[%s544 + $0x8] sm:$0xff]
      %v547 = vld [vmem:[%s544 + $0x10] sm:$0xff]
      %v548 = vld [vmem:[%s544 + $0x18] sm:$0xff]
      %v549 = vld [vmem:[%s544 + $0x20] sm:$0xff]
      %v550 = vld [vmem:[%s544 + $0x28] sm:$0xff]
      %v551 = vld [vmem:[%s544 + $0x30] sm:$0xff]
      %v552 = vld [vmem:[%s544 + $0x38] sm:$0xff]
      %vm556 = vcmask 1046528
      %v557 = vrot.slane %v533, 1
      %v558 = vrot.slane %v534, 1
      %v559 = vsel %vm556, %v557, %v558
      %v560 = vrot.slane %v535, 1
      %v561 = vsel %vm556, %v558, %v560
      %v562 = vsel %vm221, %v559, 0
      %v564 = vsel %vm221, %v561, 0
      %566 = vmatprep.subr.mxu0 0.0
      %567 = vmatpush1.msra.mxu0 %v545
      %568 = vmatprep.subr.mxu0 0.0
      %569 = vmatpush1.msra.mxu0 %v546
      %570 = vmatprep.subr.mxu0 0.0
      %571 = vmatpush1.msra.mxu0 %v547
      %572 = vmatprep.subr.mxu0 0.0
      %573 = vmatpush1.msra.mxu0 %v548
      %574 = vmatprep.subr.mxu0 0.0
      %575 = vmatpush1.msra.mxu0 %v549
      %576 = vmatprep.subr.mxu0 0.0
      %577 = vmatpush1.msra.mxu0 %v550
      %578 = vmatprep.subr.mxu0 0.0
      %579 = vmatpush1.msra.mxu0 %v551
      %580 = vmatprep.subr.mxu0 0.0
      %581 = vmatpush1.msra.mxu0 %v552
      %582 = vmatprep.subr.mxu0 0.0
      %583 = vmatpush1.msra.mxu0 0.0
      %584 = vmatprep.subr.mxu0 0.0
      %585 = vmatpush1.msra.mxu0 0.0
      %586 = vmatprep.subr.mxu0 0.0
      %587 = vmatpush1.msra.mxu0 0.0
      %588 = vmatprep.subr.mxu0 0.0
      %589 = vmatpush1.msra.mxu0 0.0
      %590 = vmatprep.subr.mxu0 0.0
      %591 = vmatpush1.msra.mxu0 0.0
      %592 = vmatprep.subr.mxu0 0.0
      %593 = vmatpush1.msra.mxu0 0.0
      %594 = vmatprep.subr.mxu0 0.0
      %595 = vmatpush1.msra.mxu0 0.0
      %596 = vmatprep.subr.mxu0 0.0
      %597 = vmatpush1.msra.mxu0 0.0
      %598 = vmatprep.subr.mxu0 0.0
      %599 = vmatpush1.msra.mxu0 0.0
      %600 = vmatprep.subr.mxu0 0.0
      %601 = vmatpush1.msra.mxu0 0.0
      %602 = vmatprep.subr.mxu0 0.0
      %603 = vmatpush1.msra.mxu0 0.0
      %604 = vmatprep.subr.mxu0 0.0
      %605 = vmatpush1.msra.mxu0 0.0
      %606 = vmatprep.subr.mxu0 0.0
      %607 = vmatpush1.msra.mxu0 0.0
      %608 = vmatprep.subr.mxu0 0.0
      %609 = vmatpush1.msra.mxu0 0.0
      %610 = vmatprep.subr.mxu0 0.0
      %611 = vmatpush1.msra.mxu0 0.0
      %612 = vmatprep.subr.mxu0 0.0
      %613 = vmatpush1.msra.mxu0 0.0
      %614 = vmatprep.subr.mxu0 0.0
      %615 = vmatpush1.msra.mxu0 0.0
      %616 = vmatprep.subr.mxu0 0.0
      %617 = vmatpush1.msra.mxu0 0.0
      %618 = vmatprep.subr.mxu0 0.0
      %619 = vmatpush1.msra.mxu0 0.0
      %620 = vmatprep.subr.mxu0 0.0
      %621 = vmatpush1.msra.mxu0 0.0
      %622 = vmatprep.subr.mxu0 0.0
      %623 = vmatpush1.msra.mxu0 0.0
      %624 = vmatprep.subr.mxu0 0.0
      %625 = vmatpush1.msra.mxu0 0.0
      %626 = vmatprep.subr.mxu0 0.0
      %627 = vmatpush1.msra.mxu0 0.0
      %628 = vmatprep.subr.mxu0 0.0
      %629 = vmatpush1.msra.mxu0 0.0
      %630 = vmatprep.mubr.f32.mxu0 0.0
      %631 = vmatmul.mubr.f32.gmra.mrb[0].mxu0 %v562
      %v632 = vpop.f32.mrb[0].mxu0
      %v633 = vadd.f32 0.0, %v632
      %v634 = vpop.f32.mrb[0].mxu0
      %635 = vmatprep.mubr.f32.mxu0 0.0
      %636 = vmatmul.mubr.f32.gmra.mrb[0].mxu0 %v564
      %v637 = vpop.f32.mrb[0].mxu0
      %v638 = vadd.f32 0.0, %v637
      %v639 = vpop.f32.mrb[0].mxu0
      %640 = vdwg.mxu0
      %v641 = vsel %vm221, %v533, 0
      %v643 = vsel %vm221, %v534, 0
      %645 = vmatprep.subr.mxu0 0.0
      %646 = vmatpush1.msra.mxu0 %v536
      %647 = vmatprep.subr.mxu0 0.0
      %648 = vmatpush1.msra.mxu0 %v537
      %649 = vmatprep.subr.mxu0 0.0
      %650 = vmatpush1.msra.mxu0 %v538
      %651 = vmatprep.subr.mxu0 0.0
      %652 = vmatpush1.msra.mxu0 %v539
      %653 = vmatprep.subr.mxu0 0.0
      %654 = vmatpush1.msra.mxu0 %v540
      %655 = vmatprep.subr.mxu0 0.0
      %656 = vmatpush1.msra.mxu0 %v541
      %657 = vmatprep.subr.mxu0 0.0
      %658 = vmatpush1.msra.mxu0 %v542
      %659 = vmatprep.subr.mxu0 0.0
      %660 = vmatpush1.msra.mxu0 %v543
      %661 = vmatprep.subr.mxu0 0.0
      %662 = vmatpush1.msra.mxu0 0.0
      %663 = vmatprep.subr.mxu0 0.0
      %664 = vmatpush1.msra.mxu0 0.0
      %665 = vmatprep.subr.mxu0 0.0
      %666 = vmatpush1.msra.mxu0 0.0
      %667 = vmatprep.subr.mxu0 0.0
      %668 = vmatpush1.msra.mxu0 0.0
      %669 = vmatprep.subr.mxu0 0.0
      %670 = vmatpush1.msra.mxu0 0.0
      %671 = vmatprep.subr.mxu0 0.0
      %672 = vmatpush1.msra.mxu0 0.0
      %673 = vmatprep.subr.mxu0 0.0
      %674 = vmatpush1.msra.mxu0 0.0
      %675 = vmatprep.subr.mxu0 0.0
      %676 = vmatpush1.msra.mxu0 0.0
      %677 = vmatprep.subr.mxu0 0.0
      %678 = vmatpush1.msra.mxu0 0.0
      %679 = vmatprep.subr.mxu0 0.0
      %680 = vmatpush1.msra.mxu0 0.0
      %681 = vmatprep.subr.mxu0 0.0
      %682 = vmatpush1.msra.mxu0 0.0
      %683 = vmatprep.subr.mxu0 0.0
      %684 = vmatpush1.msra.mxu0 0.0
      %685 = vmatprep.subr.mxu0 0.0
      %686 = vmatpush1.msra.mxu0 0.0
      %687 = vmatprep.subr.mxu0 0.0
      %688 = vmatpush1.msra.mxu0 0.0
      %689 = vmatprep.subr.mxu0 0.0
      %690 = vmatpush1.msra.mxu0 0.0
      %691 = vmatprep.subr.mxu0 0.0
      %692 = vmatpush1.msra.mxu0 0.0
      %693 = vmatprep.subr.mxu0 0.0
      %694 = vmatpush1.msra.mxu0 0.0
      %695 = vmatprep.subr.mxu0 0.0
      %696 = vmatpush1.msra.mxu0 0.0
      %697 = vmatprep.subr.mxu0 0.0
      %698 = vmatpush1.msra.mxu0 0.0
      %699 = vmatprep.subr.mxu0 0.0
      %700 = vmatpush1.msra.mxu0 0.0
      %701 = vmatprep.subr.mxu0 0.0
      %702 = vmatpush1.msra.mxu0 0.0
      %703 = vmatprep.subr.mxu0 0.0
      %704 = vmatpush1.msra.mxu0 0.0
      %705 = vmatprep.subr.mxu0 0.0
      %706 = vmatpush1.msra.mxu0 0.0
      %707 = vmatprep.subr.mxu0 0.0
      %708 = vmatpush1.msra.mxu0 0.0
      %709 = vmatprep.mubr.f32.mxu0 0.0
      %710 = vmatmul.mubr.f32.gmra.mrb[0].mxu0 %v641
      %v711 = vpop.f32.mrb[0].mxu0
      %v712 = vadd.f32 %v633, %v711
      %v713 = vpop.f32.mrb[0].mxu0
      %714 = vmatprep.mubr.f32.mxu0 0.0
      %715 = vmatmul.mubr.f32.gmra.mrb[0].mxu0 %v643
      %v716 = vpop.f32.mrb[0].mxu0
      %v717 = vadd.f32 %v638, %v716
      %v718 = vpop.f32.mrb[0].mxu0
      %719 = vdwg.mxu0
      %s720 = scalar_lea.vmem %s2, 128
      %v721 = vld [vmem:[%s720] sm:$0xff]
      %v722 = vld [vmem:[%s720 + $0x8] sm:$0xff]
      %v723 = vld [vmem:[%s720 + $0x10] sm:$0xff]
      %v724 = vld [vmem:[%s720 + $0x18] sm:$0xff]
      %v725 = vld [vmem:[%s720 + $0x20] sm:$0xff]
      %v726 = vld [vmem:[%s720 + $0x28] sm:$0xff]
      %v727 = vld [vmem:[%s720 + $0x30] sm:$0xff]
      %v728 = vld [vmem:[%s720 + $0x38] sm:$0xff]
      %vm729 = vcmask 1045504
      %v730 = vrot.slane %v533, 2
      %v731 = vrot.slane %v534, 2
      %v732 = vsel %vm729, %v730, %v731
      %v733 = vrot.slane %v535, 2
      %v734 = vsel %vm729, %v731, %v733
      %v735 = vsel %vm221, %v732, 0
      %v737 = vsel %vm221, %v734, 0
      %739 = vmatprep.subr.mxu0 0.0
      %740 = vmatpush1.msra.mxu0 %v721
      %741 = vmatprep.subr.mxu0 0.0
      %742 = vmatpush1.msra.mxu0 %v722
      %743 = vmatprep.subr.mxu0 0.0
      %744 = vmatpush1.msra.mxu0 %v723
      %745 = vmatprep.subr.mxu0 0.0
      %746 = vmatpush1.msra.mxu0 %v724
      %747 = vmatprep.subr.mxu0 0.0
      %748 = vmatpush1.msra.mxu0 %v725
      %749 = vmatprep.subr.mxu0 0.0
      %750 = vmatpush1.msra.mxu0 %v726
      %751 = vmatprep.subr.mxu0 0.0
      %752 = vmatpush1.msra.mxu0 %v727
      %753 = vmatprep.subr.mxu0 0.0
      %754 = vmatpush1.msra.mxu0 %v728
      %755 = vmatprep.subr.mxu0 0.0
      %756 = vmatpush1.msra.mxu0 0.0
      %757 = vmatprep.subr.mxu0 0.0
      %758 = vmatpush1.msra.mxu0 0.0
      %759 = vmatprep.subr.mxu0 0.0
      %760 = vmatpush1.msra.mxu0 0.0
      %761 = vmatprep.subr.mxu0 0.0
      %762 = vmatpush1.msra.mxu0 0.0
      %763 = vmatprep.subr.mxu0 0.0
      %764 = vmatpush1.msra.mxu0 0.0
      %765 = vmatprep.subr.mxu0 0.0
      %766 = vmatpush1.msra.mxu0 0.0
      %767 = vmatprep.subr.mxu0 0.0
      %768 = vmatpush1.msra.mxu0 0.0
      %769 = vmatprep.subr.mxu0 0.0
      %770 = vmatpush1.msra.mxu0 0.0
      %771 = vmatprep.subr.mxu0 0.0
      %772 = vmatpush1.msra.mxu0 0.0
      %773 = vmatprep.subr.mxu0 0.0
      %774 = vmatpush1.msra.mxu0 0.0
      %775 = vmatprep.subr.mxu0 0.0
      %776 = vmatpush1.msra.mxu0 0.0
      %777 = vmatprep.subr.mxu0 0.0
      %778 = vmatpush1.msra.mxu0 0.0
      %779 = vmatprep.subr.mxu0 0.0
      %780 = vmatpush1.msra.mxu0 0.0
      %781 = vmatprep.subr.mxu0 0.0
      %782 = vmatpush1.msra.mxu0 0.0
      %783 = vmatprep.subr.mxu0 0.0
      %784 = vmatpush1.msra.mxu0 0.0
      %785 = vmatprep.subr.mxu0 0.0
      %786 = vmatpush1.msra.mxu0 0.0
      %787 = vmatprep.subr.mxu0 0.0
      %788 = vmatpush1.msra.mxu0 0.0
      %789 = vmatprep.subr.mxu0 0.0
      %790 = vmatpush1.msra.mxu0 0.0
      %791 = vmatprep.subr.mxu0 0.0
      %792 = vmatpush1.msra.mxu0 0.0
      %793 = vmatprep.subr.mxu0 0.0
      %794 = vmatpush1.msra.mxu0 0.0
      %795 = vmatprep.subr.mxu0 0.0
      %796 = vmatpush1.msra.mxu0 0.0
      %797 = vmatprep.subr.mxu0 0.0
      %798 = vmatpush1.msra.mxu0 0.0
      %799 = vmatprep.subr.mxu0 0.0
      %800 = vmatpush1.msra.mxu0 0.0
      %801 = vmatprep.subr.mxu0 0.0
      %802 = vmatpush1.msra.mxu0 0.0
      %803 = vmatprep.mubr.f32.mxu0 0.0
      %804 = vmatmul.mubr.f32.gmra.mrb[0].mxu0 %v735
      %v805 = vpop.f32.mrb[0].mxu0
      %v806 = vadd.f32 0.0, %v805
      %v807 = vpop.f32.mrb[0].mxu0
      %808 = vmatprep.mubr.f32.mxu0 0.0
      %809 = vmatmul.mubr.f32.gmra.mrb[0].mxu0 %v737
      %v810 = vpop.f32.mrb[0].mxu0
      %v811 = vadd.f32 0.0, %v810
      %v812 = vpop.f32.mrb[0].mxu0
      %813 = vdwg.mxu0
      %v814 = vadd.f32 %v712, %v806
      %v815 = vadd.f32 %v717, %v811
      %v816 = vld [vmem:[%s401] sm:$0xff]
      %v817 = vld [vmem:[%s401 + $0x8] sm:$0xff]
      %v818 = vadd.f32 %v814, %v816
      %v819 = vadd.f32 %v815, %v817
      %v820 = vmax.f32 %v818, 0.0
      %v821 = vmax.f32 %v819, 0.0
      %822 = vst.msk [vmem:[%s192] sm:$0xff] %vm221, %v820
      %823 = vst.msk [vmem:[%s192 + $0x8] sm:$0xff] %vm221, %v821
      %s824 = smul.u32 2, %s19
      %p825 = scmp.lt.s32.totalorder %s18, 1
      %s826 = scalar_select %p825, %s18, 1
      %p827 = scmp.lt.s32.totalorder %s824, 1
      %s828 = scalar_select %p827, %s824, 1
      %s829 = smul.addr %s826, 2
      %s830 = sadd.s32 %s828, %s829
      %s831 = smul.addr %s830, 8
      %s832 = scalar_lea.vmem %s3, %s831
      // Predicated region
      $region33: #{block2_forward.1} parent=31 // pred_check
        %p833 = pneg %p114
      $region34: #{block2_forward.1} parent=31 // pred_check_branch
        %835 = sbr.rel (%p833) target = $region36
      $region35: #{block2_forward.1} parent=31 // pred_region
        %s836 = smul.u32 2, %s19
      $region36: #{block2_forward.1} parent=31 // pred_fallthru
        _
    $region32: #{block2_forward.1} parent=5 // pred_fallthru
      _
    %p837 = scmp.le.s32.totalorder 2, %s9
    // Predicated region
    $region37: #{block2_forward.1} parent=5 // pred_check
      %p838 = pneg %p837
    $region38: #{block2_forward.1} parent=5 // pred_check_branch
      %840 = sbr.rel (%p838) target = $region40
    $region39: #{block2_forward.1} parent=5 // pred_region
      %s841 = ssub.s32 %s9, 2
      // Predicated region
      $region41: #{block2_forward.1} parent=39 // pred_check
        %p842 = pneg %p120
      $region42: #{block2_forward.1} parent=39 // pred_check_branch
        %844 = sbr.rel (%p842) target = $region44
      $region43: #{block2_forward.1} parent=39 // pred_region
        %s845 = smul.u32 2, %s21
        %p846 = scmp.lt.s32.totalorder %s20, 1
        %s847 = scalar_select %p846, %s20, 1
        %p848 = scmp.lt.s32.totalorder %s845, 1
        %s849 = scalar_select %p848, %s845, 1
        %s850 = smul.addr %s847, 2
        %s851 = sadd.s32 %s849, %s850
        %s852 = smul.addr %s851, 8
        %s853 = scalar_lea.vmem %s3, %s852
      $region44: #{block2_forward.1} parent=39 // pred_fallthru
        _
    $region40: #{block2_forward.1} parent=5 // pred_fallthru
      _
  $region6: #{block2_forward.1} parent=0 // loop_footer
    %s13 = sadd.s32 1, %s9
  $region7: #{block2_forward.1} parent=0 // loop_footer_branch
    %8 = sbr.rel target = $region3
  $region8: #{block2_forward.1} parent=0 // loop_exit
    _

</llo_original>
